<compile_context>
chip_gen: v7x
topology: tpu7x:2x2x1
jax: 0.10.0
libtpu: 0.0.40
codegen_flags: <defaults>
</compile_context>

<pallas_src>
import functools
import math

import jax
import jax.numpy as jnp
from jax.experimental import pallas as pl
from jax.experimental.pallas import tpu as pltpu  # noqa: F401  (TPU backend)

LANE = 128     # TPU vreg lane width (last dim)
SUBLANE = 8    # TPU vreg sublane depth for f32 (second-to-last dim)


def _round_up(n, m):
    return (n + m - 1) // m * m


def _make_mlp_kernel(acts):
    """Fused MLP kernel. refs = (x_ref, w0, b0, w1, b1, ..., o_ref).

    All feature dims are lane-padded to multiples of 128 with zeros; since
    GELU(0) == 0 and tanh(0) == 0, padded lanes stay exactly zero layer to
    layer, so the padded computation equals the unpadded one.
    """

    def kernel(*refs):
        x_ref = refs[0]
        o_ref = refs[-1]
        wb = refs[1:-1]

        y = x_ref[...]
        inv_sqrt2 = jnp.float32(1.0 / math.sqrt(2.0))
        for i, act in enumerate(acts):
            w = wb[2 * i][...]
            b = wb[2 * i + 1][...]          # (1, N_pad) -> broadcasts over rows
            y = jnp.dot(y, w, preferred_element_type=jnp.float32) + b
            if act == "gelu":
                # exact GELU: 0.5 * x * (1 + erf(x / sqrt(2)))
                # (matches torch.nn.functional.gelu default)
                y = 0.5 * y * (1.0 + jax.lax.erf(y * inv_sqrt2))
            elif act == "tanh":
                y = jnp.tanh(y)
            else:
                raise ValueError(f"unknown activation {act}")
        o_ref[...] = y.astype(o_ref.dtype)

    return kernel


def init_generic_generator_params(key, input_size, layers, output_size):
    """Deterministic init mirroring the PyTorch module:
       - weights: xavier_normal_ (std = sqrt(2 / (fan_in + fan_out)))
       - biases:  PyTorch Linear default, uniform(-1/sqrt(fan_in), 1/sqrt(fan_in))
    Weights are stored as (in, out), zero lane-padded to multiples of 128 once
    here; biases are stored pre-padded as (1, N_pad).
    """
    dims = [input_size] + list(layers) + [output_size]
    params = []
    for i in range(len(dims) - 1):
        fan_in, fan_out = dims[i], dims[i + 1]
        key, wk, bk = jax.random.split(key, 3)
        std = math.sqrt(2.0 / (fan_in + fan_out))
        w = std * jax.random.normal(wk, (fan_in, fan_out), dtype=jnp.float32)
        bound = 1.0 / math.sqrt(fan_in)
        b = jax.random.uniform(
            bk, (fan_out,), dtype=jnp.float32, minval=-bound, maxval=bound
        )
        k_pad = _round_up(fan_in, LANE)
        n_pad = _round_up(fan_out, LANE)
        w_pad = jnp.zeros((k_pad, n_pad), jnp.float32).at[:fan_in, :fan_out].set(w)
        b_pad = jnp.zeros((1, n_pad), jnp.float32).at[0, :fan_out].set(b)
        params.append((w_pad, b_pad))
    return params


@functools.partial(jax.jit, static_argnums=(2, 3))
def generic_generator_forward(x, params, output_size, nbr_tanh=2):
    """Forward pass: GELU on all but the last `nbr_tanh` layers, tanh on those.
    One fused pallas_call for the whole stack; output sliced back to
    (batch, output_size).
    """
    # TODO(synk): only the GELU activation path of the module is implemented
    # (LeakyReLU / CELU / SELU variants would just swap the elementwise op).
    n_layers = len(params)
    acts = tuple(
        "gelu" if e < n_layers - nbr_tanh else "tanh" for e in range(n_layers)
    )

    batch, in_features = x.shape
    m_pad = _round_up(batch, SUBLANE)
    k_pad = params[0][0].shape[0]
    n_out_pad = params[-1][0].shape[1]

    # Zero-pad the input to (m_pad, k_pad); padded columns hit zero weight
    # rows so they contribute nothing, padded rows are sliced off at the end.
    x_pad = jnp.zeros((m_pad, k_pad), x.dtype).at[:batch, :in_features].set(x)

    flat_inputs = [x_pad]
    in_specs = [pl.BlockSpec((m_pad, k_pad), lambda: (0, 0))]
    for w, b in params:
        flat_inputs.append(w)
        flat_inputs.append(b)
        in_specs.append(pl.BlockSpec(w.shape, lambda: (0, 0)))
        in_specs.append(pl.BlockSpec(b.shape, lambda: (0, 0)))

    out_pad = pl.pallas_call(
        _make_mlp_kernel(acts),
        out_shape=jax.ShapeDtypeStruct((m_pad, n_out_pad), x.dtype),
        in_specs=in_specs,
        out_specs=pl.BlockSpec((m_pad, n_out_pad), lambda: (0, 0)),
    )(*flat_inputs)

    # Slice back to the true output width; fused by XLA under this jit.
    return out_pad[:batch, :output_size]


if __name__ == "__main__":
    # Small shapes consistent with GenericGenerator(input_size=8, output_size=8,
    # layers=[32, 32, 16], activation='GELU', nbr_tanh=2)
    input_size = 8
    output_size = 8
    hidden_layers = [32, 32, 16]
    nbr_tanh = 2
    batch = 8

    key = jax.random.PRNGKey(0)
    key, pkey, xkey = jax.random.split(key, 3)

    params = init_generic_generator_params(pkey, input_size, hidden_layers, output_size)
    x = jax.random.normal(xkey, (batch, input_size), dtype=jnp.float32)

    out = generic_generator_forward(x, params, output_size, nbr_tanh)
    out = jax.block_until_ready(out)

    assert out.shape == (batch, output_size)
    assert bool(jnp.all(jnp.isfinite(out)))
    # final layers are tanh -> outputs bounded in [-1, 1]
    assert bool(jnp.all(jnp.abs(out) <= 1.0 + 1e-6))

    print("KERNEL_OK")
</pallas_src>

<mosaic_0001>
module attributes {stable_mosaic.version = 11 : i64} {
  func.func @kernel(%arg0: memref<8x128xf32, #tpu.memory_space<vmem>>, %arg1: memref<128x128xf32, #tpu.memory_space<vmem>>, %arg2: memref<1x128xf32, #tpu.memory_space<vmem>>, %arg3: memref<128x128xf32, #tpu.memory_space<vmem>>, %arg4: memref<1x128xf32, #tpu.memory_space<vmem>>, %arg5: memref<128x128xf32, #tpu.memory_space<vmem>>, %arg6: memref<1x128xf32, #tpu.memory_space<vmem>>, %arg7: memref<128x128xf32, #tpu.memory_space<vmem>>, %arg8: memref<1x128xf32, #tpu.memory_space<vmem>>, %arg9: memref<8x128xf32, #tpu.memory_space<vmem>>) attributes {dimension_semantics = [], scalar_prefetch = 0 : i64, scratch_operands = 0 : i64, tpu.core_type = #tpu.core_type<tc>} {
    %c0 = arith.constant 0 : index
    %c0_0 = arith.constant 0 : index
    %0 = vector.load %arg0[%c0, %c0_0] : memref<8x128xf32, #tpu.memory_space<vmem>>, vector<8x128xf32>
    %c0_1 = arith.constant 0 : index
    %c0_2 = arith.constant 0 : index
    %1 = vector.load %arg1[%c0_1, %c0_2] : memref<128x128xf32, #tpu.memory_space<vmem>>, vector<128x128xf32>
    %c0_3 = arith.constant 0 : index
    %c0_4 = arith.constant 0 : index
    %2 = vector.load %arg2[%c0_3, %c0_4] : memref<1x128xf32, #tpu.memory_space<vmem>>, vector<1x128xf32>
    %cst = arith.constant dense<0.000000e+00> : vector<8x128xf32>
    %3 = tpu.matmul %0, %1, %cst {dimension_numbers = #tpu.dot_dimension_numbers<[1], [0], [0], [1], [0, 0, 1, 1], [], []>} : vector<8x128xf32>, vector<128x128xf32>, vector<8x128xf32> -> vector<8x128xf32>
    %4 = vector.broadcast %2 : vector<1x128xf32> to vector<8x128xf32>
    %5 = arith.addf %3, %4 : vector<8x128xf32>
    %cst_5 = arith.constant 5.000000e-01 : f32
    %6 = vector.broadcast %cst_5 : f32 to vector<8x128xf32>
    %7 = arith.mulf %6, %5 : vector<8x128xf32>
    %cst_6 = arith.constant 0.707106769 : f32
    %8 = vector.broadcast %cst_6 : f32 to vector<8x128xf32>
    %9 = arith.mulf %5, %8 : vector<8x128xf32>
    %10 = math.erf %9 : vector<8x128xf32>
    %cst_7 = arith.constant 1.000000e+00 : f32
    %11 = vector.broadcast %cst_7 : f32 to vector<8x128xf32>
    %12 = arith.addf %11, %10 : vector<8x128xf32>
    %13 = arith.mulf %7, %12 : vector<8x128xf32>
    %c0_8 = arith.constant 0 : index
    %c0_9 = arith.constant 0 : index
    %14 = vector.load %arg3[%c0_8, %c0_9] : memref<128x128xf32, #tpu.memory_space<vmem>>, vector<128x128xf32>
    %c0_10 = arith.constant 0 : index
    %c0_11 = arith.constant 0 : index
    %15 = vector.load %arg4[%c0_10, %c0_11] : memref<1x128xf32, #tpu.memory_space<vmem>>, vector<1x128xf32>
    %cst_12 = arith.constant dense<0.000000e+00> : vector<8x128xf32>
    %16 = tpu.matmul %13, %14, %cst_12 {dimension_numbers = #tpu.dot_dimension_numbers<[1], [0], [0], [1], [0, 0, 1, 1], [], []>} : vector<8x128xf32>, vector<128x128xf32>, vector<8x128xf32> -> vector<8x128xf32>
    %17 = vector.broadcast %15 : vector<1x128xf32> to vector<8x128xf32>
    %18 = arith.addf %16, %17 : vector<8x128xf32>
    %cst_13 = arith.constant 5.000000e-01 : f32
    %19 = vector.broadcast %cst_13 : f32 to vector<8x128xf32>
    %20 = arith.mulf %19, %18 : vector<8x128xf32>
    %cst_14 = arith.constant 0.707106769 : f32
    %21 = vector.broadcast %cst_14 : f32 to vector<8x128xf32>
    %22 = arith.mulf %18, %21 : vector<8x128xf32>
    %23 = math.erf %22 : vector<8x128xf32>
    %cst_15 = arith.constant 1.000000e+00 : f32
    %24 = vector.broadcast %cst_15 : f32 to vector<8x128xf32>
    %25 = arith.addf %24, %23 : vector<8x128xf32>
    %26 = arith.mulf %20, %25 : vector<8x128xf32>
    %c0_16 = arith.constant 0 : index
    %c0_17 = arith.constant 0 : index
    %27 = vector.load %arg5[%c0_16, %c0_17] : memref<128x128xf32, #tpu.memory_space<vmem>>, vector<128x128xf32>
    %c0_18 = arith.constant 0 : index
    %c0_19 = arith.constant 0 : index
    %28 = vector.load %arg6[%c0_18, %c0_19] : memref<1x128xf32, #tpu.memory_space<vmem>>, vector<1x128xf32>
    %cst_20 = arith.constant dense<0.000000e+00> : vector<8x128xf32>
    %29 = tpu.matmul %26, %27, %cst_20 {dimension_numbers = #tpu.dot_dimension_numbers<[1], [0], [0], [1], [0, 0, 1, 1], [], []>} : vector<8x128xf32>, vector<128x128xf32>, vector<8x128xf32> -> vector<8x128xf32>
    %30 = vector.broadcast %28 : vector<1x128xf32> to vector<8x128xf32>
    %31 = arith.addf %29, %30 : vector<8x128xf32>
    %32 = math.tanh %31 : vector<8x128xf32>
    %c0_21 = arith.constant 0 : index
    %c0_22 = arith.constant 0 : index
    %33 = vector.load %arg7[%c0_21, %c0_22] : memref<128x128xf32, #tpu.memory_space<vmem>>, vector<128x128xf32>
    %c0_23 = arith.constant 0 : index
    %c0_24 = arith.constant 0 : index
    %34 = vector.load %arg8[%c0_23, %c0_24] : memref<1x128xf32, #tpu.memory_space<vmem>>, vector<1x128xf32>
    %cst_25 = arith.constant dense<0.000000e+00> : vector<8x128xf32>
    %35 = tpu.matmul %32, %33, %cst_25 {dimension_numbers = #tpu.dot_dimension_numbers<[1], [0], [0], [1], [0, 0, 1, 1], [], []>} : vector<8x128xf32>, vector<128x128xf32>, vector<8x128xf32> -> vector<8x128xf32>
    %36 = vector.broadcast %34 : vector<1x128xf32> to vector<8x128xf32>
    %37 = arith.addf %35, %36 : vector<8x128xf32>
    %38 = math.tanh %37 : vector<8x128xf32>
    %c0_26 = arith.constant 0 : index
    %c0_27 = arith.constant 0 : index
    %39 = vector.load %arg9[%c0_26, %c0_27] : memref<8x128xf32, #tpu.memory_space<vmem>>, vector<8x128xf32>
    tpu.vector_store %arg9[%c0_26, %c0_27], %38 {strides = array<i32>} : memref<8x128xf32, #tpu.memory_space<vmem>>, vector<8x128xf32>,
    return
  }
}

</mosaic_0001>

<llo_original>
// kernel: generic_generator_forward.1
$region0: #{generic_generator_forward.1}
  #allocation0 [shape = 'u32[]', space=smem, size = 0x4, offset = 0x4, fixed_abs, tag = 'smem constant byte address 0x4 - core index']
  #allocation1 [shape = 'u32[144,128]{1,0:T(1,128)}', space=vmem, size = 0x12000, scoped, tag = 'internal scratch']
  %s0 = inlined_call_operand.vmem [shape: f32[8,128], index: 0, kind: input, shape index: {}]
  %s1 = inlined_call_operand.hbm [shape: f32[128,128], index: 1, kind: input, shape index: {}]
  %s2 = inlined_call_operand.vmem [shape: f32[1,128], index: 2, kind: input, shape index: {}]
  %s3 = inlined_call_operand.hbm [shape: f32[128,128], index: 3, kind: input, shape index: {}]
  %s4 = inlined_call_operand.vmem [shape: f32[1,128], index: 4, kind: input, shape index: {}]
  %s5 = inlined_call_operand.hbm [shape: f32[128,128], index: 5, kind: input, shape index: {}]
  %s6 = inlined_call_operand.vmem [shape: f32[1,128], index: 6, kind: input, shape index: {}]
  %s7 = inlined_call_operand.hbm [shape: f32[128,128], index: 7, kind: input, shape index: {}]
  %s8 = inlined_call_operand.vmem [shape: f32[1,128], index: 8, kind: input, shape index: {}]
  %s9 = inlined_call_operand.hbm [shape: f32[8,128], index: 9, kind: output, shape index: {}]
  %s10 = sld [smem:[#allocation0]]
  $region62: #{generic_generator_forward.1} parent=0
    _
  %s12 = ssub.s32 1, %s10
  %s13 = scalar_select 0, %s12, %s10
  $region1: #{generic_generator_forward.1} parent=0
    #allocation2 [shape = 'u8[65536]{0}', space=vmem, size = 0x10000, scoped, tag = 'input window, operand 1, single buffered']
    #allocation3 [shape = 's32[1]{0}', space=sflag, size = 0x4, scoped, tag = 'scoped memory for generic_generator_forward.1']
    #allocation4 [shape = 's32[1]{0}', space=sflag, size = 0x4, scoped, tag = 'scoped memory for generic_generator_forward.1']
    #allocation5 [shape = 'u8[65536]{0}', space=vmem, size = 0x10000, scoped, tag = 'input window, operand 3, single buffered']
    #allocation6 [shape = 's32[1]{0}', space=sflag, size = 0x4, scoped, tag = 'scoped memory for generic_generator_forward.1']
    #allocation7 [shape = 'u8[65536]{0}', space=vmem, size = 0x10000, scoped, tag = 'input window, operand 5, single buffered']
    #allocation8 [shape = 'u8[65536]{0}', space=vmem, size = 0x10000, scoped, tag = 'input window, operand 7, single buffered']
    #allocation9 [shape = 's32[1]{0}', space=sflag, size = 0x4, scoped, tag = 'scoped memory for generic_generator_forward.1']
    #allocation10 [shape = 'u8[4096]{0}', space=vmem, size = 0x1000, scoped, tag = 'output window, operand 0, single buffered']
    %14 = vsyncpa [#allocation3], 0
    %15 = vsyncpa [#allocation6], 0
    %16 = vsyncpa [#allocation9], 0
    %17 = vsyncpa [#allocation4], 0
    // Predicated region
    $region2: #{generic_generator_forward.1} parent=1 // pred_check
      _
    $region3: #{generic_generator_forward.1} parent=1 // pred_check_branch
      %19 = sbr.rel (0) target = $region5
    $region4: #{generic_generator_forward.1} parent=1 // pred_region
      _
    $region5: #{generic_generator_forward.1} parent=1 // pred_fallthru
      _
    // Predicated region
    $region6: #{generic_generator_forward.1} parent=1 // pred_check
      _
    $region7: #{generic_generator_forward.1} parent=1 // pred_check_branch
      %21 = sbr.rel (0) target = $region9
    $region8: #{generic_generator_forward.1} parent=1 // pred_region
      %s23 = ssub.s32 2048, 2048
      %24 = vsyncadd [#allocation3], %s23
      %s25 = sshll.u32 [#allocation2], 4
      %s26 = int_to_ptr.vmem [resolvable:$true] %s25
      %31 = dma.hbm_to_vmem [thread:$0]  %s1, 2048, %s26, [#allocation3], 128, 128, 8
    $region9: #{generic_generator_forward.1} parent=1 // pred_fallthru
      _
    // Predicated region
    $region10: #{generic_generator_forward.1} parent=1 // pred_check
      _
    $region11: #{generic_generator_forward.1} parent=1 // pred_check_branch
      %33 = sbr.rel (0) target = $region13
    $region12: #{generic_generator_forward.1} parent=1 // pred_region
      _
    $region13: #{generic_generator_forward.1} parent=1 // pred_fallthru
      _
    // Predicated region
    $region14: #{generic_generator_forward.1} parent=1 // pred_check
      _
    $region15: #{generic_generator_forward.1} parent=1 // pred_check_branch
      %35 = sbr.rel (0) target = $region17
    $region16: #{generic_generator_forward.1} parent=1 // pred_region
      %s37 = ssub.s32 2048, 2048
      %38 = vsyncadd [#allocation6], %s37
      %s39 = sshll.u32 [#allocation5], 4
      %s40 = int_to_ptr.vmem [resolvable:$true] %s39
      %45 = dma.hbm_to_vmem [thread:$0]  %s3, 2048, %s40, [#allocation6], 128, 128, 8
    $region17: #{generic_generator_forward.1} parent=1 // pred_fallthru
      _
    // Predicated region
    $region18: #{generic_generator_forward.1} parent=1 // pred_check
      _
    $region19: #{generic_generator_forward.1} parent=1 // pred_check_branch
      %47 = sbr.rel (0) target = $region21
    $region20: #{generic_generator_forward.1} parent=1 // pred_region
      _
    $region21: #{generic_generator_forward.1} parent=1 // pred_fallthru
      _
    // Predicated region
    $region22: #{generic_generator_forward.1} parent=1 // pred_check
      _
    $region23: #{generic_generator_forward.1} parent=1 // pred_check_branch
      %49 = sbr.rel (0) target = $region25
    $region24: #{generic_generator_forward.1} parent=1 // pred_region
      %s51 = ssub.s32 2048, 2048
      %52 = vsyncadd [#allocation6], %s51
      %s53 = sshll.u32 [#allocation7], 4
      %s54 = int_to_ptr.vmem [resolvable:$true] %s53
      %59 = dma.hbm_to_vmem [thread:$0]  %s5, 2048, %s54, [#allocation6], 128, 128, 8
    $region25: #{generic_generator_forward.1} parent=1 // pred_fallthru
      _
    // Predicated region
    $region26: #{generic_generator_forward.1} parent=1 // pred_check
      _
    $region27: #{generic_generator_forward.1} parent=1 // pred_check_branch
      %61 = sbr.rel (0) target = $region29
    $region28: #{generic_generator_forward.1} parent=1 // pred_region
      _
    $region29: #{generic_generator_forward.1} parent=1 // pred_fallthru
      _
    // Predicated region
    $region30: #{generic_generator_forward.1} parent=1 // pred_check
      _
    $region31: #{generic_generator_forward.1} parent=1 // pred_check_branch
      %63 = sbr.rel (0) target = $region33
    $region32: #{generic_generator_forward.1} parent=1 // pred_region
      %s65 = ssub.s32 2048, 2048
      %66 = vsyncadd [#allocation9], %s65
      %s67 = sshll.u32 [#allocation8], 4
      %s68 = int_to_ptr.vmem [resolvable:$true] %s67
      %73 = dma.hbm_to_vmem [thread:$0]  %s7, 2048, %s68, [#allocation9], 128, 128, 8
    $region33: #{generic_generator_forward.1} parent=1 // pred_fallthru
      _
    // Predicated region
    $region34: #{generic_generator_forward.1} parent=1 // pred_check
      _
    $region35: #{generic_generator_forward.1} parent=1 // pred_check_branch
      %75 = sbr.rel (0) target = $region37
    $region36: #{generic_generator_forward.1} parent=1 // pred_region
      _
    $region37: #{generic_generator_forward.1} parent=1 // pred_fallthru
      _
    // Predicated region
    $region38: #{generic_generator_forward.1} parent=1 // pred_check
      _
    $region39: #{generic_generator_forward.1} parent=1 // pred_check_branch
      %77 = sbr.rel (0) target = $region41
    $region40: #{generic_generator_forward.1} parent=1 // pred_region
      %78 = dma.done [#allocation3], 2048
    $region41: #{generic_generator_forward.1} parent=1 // pred_fallthru
      _
    // Predicated region
    $region42: #{generic_generator_forward.1} parent=1 // pred_check
      _
    $region43: #{generic_generator_forward.1} parent=1 // pred_check_branch
      %80 = sbr.rel (0) target = $region45
    $region44: #{generic_generator_forward.1} parent=1 // pred_region
      %81 = dma.done [#allocation6], 2048
    $region45: #{generic_generator_forward.1} parent=1 // pred_fallthru
      _
    // Predicated region
    $region46: #{generic_generator_forward.1} parent=1 // pred_check
      _
    $region47: #{generic_generator_forward.1} parent=1 // pred_check_branch
      %83 = sbr.rel (0) target = $region49
    $region48: #{generic_generator_forward.1} parent=1 // pred_region
      %84 = dma.done [#allocation6], 2048
    $region49: #{generic_generator_forward.1} parent=1 // pred_fallthru
      _
    // Predicated region
    $region50: #{generic_generator_forward.1} parent=1 // pred_check
      _
    $region51: #{generic_generator_forward.1} parent=1 // pred_check_branch
      %86 = sbr.rel (0) target = $region53
    $region52: #{generic_generator_forward.1} parent=1 // pred_region
      %87 = dma.done [#allocation9], 2048
    $region53: #{generic_generator_forward.1} parent=1 // pred_fallthru
      _
    %v88 = vld [vmem:[%s0] sm:$0xff]
    %v89 = vld [vmem:[#allocation2] sm:$0xff]
    %v90 = vld [vmem:[#allocation2 + $0x8] sm:$0xff]
    %v91 = vld [vmem:[#allocation2 + $0x10] sm:$0xff]
    %v92 = vld [vmem:[#allocation2 + $0x18] sm:$0xff]
    %v93 = vld [vmem:[#allocation2 + $0x20] sm:$0xff]
    %v94 = vld [vmem:[#allocation2 + $0x28] sm:$0xff]
    %v95 = vld [vmem:[#allocation2 + $0x30] sm:$0xff]
    %v96 = vld [vmem:[#allocation2 + $0x38] sm:$0xff]
    %v97 = vld [vmem:[#allocation2 + $0x40] sm:$0xff]
    %v98 = vld [vmem:[#allocation2 + $0x48] sm:$0xff]
    %v99 = vld [vmem:[#allocation2 + $0x50] sm:$0xff]
    %v100 = vld [vmem:[#allocation2 + $0x58] sm:$0xff]
    %v101 = vld [vmem:[#allocation2 + $0x60] sm:$0xff]
    %v102 = vld [vmem:[#allocation2 + $0x68] sm:$0xff]
    %v103 = vld [vmem:[#allocation2 + $0x70] sm:$0xff]
    %v104 = vld [vmem:[#allocation2 + $0x78] sm:$0xff]
    %v105 = vld [vmem:[%s2] sm:$0x1]
    %v107 = vlaneseq
    %v108 = vshrl.u32 %v107, 7
    %v109 = vsub.s32 0, %v108
    %v110 = vrot.slane %v105, %v109
    %112 = vmatprep.subr.mxu0 0.0
    %113 = vmatpush1.msra.mxu0 %v89
    %114 = vmatprep.subr.mxu0 0.0
    %115 = vmatpush1.msra.mxu0 %v90
    %116 = vmatprep.subr.mxu0 0.0
    %117 = vmatpush1.msra.mxu0 %v91
    %118 = vmatprep.subr.mxu0 0.0
    %119 = vmatpush1.msra.mxu0 %v92
    %120 = vmatprep.subr.mxu0 0.0
    %121 = vmatpush1.msra.mxu0 %v93
    %122 = vmatprep.subr.mxu0 0.0
    %123 = vmatpush1.msra.mxu0 %v94
    %124 = vmatprep.subr.mxu0 0.0
    %125 = vmatpush1.msra.mxu0 %v95
    %126 = vmatprep.subr.mxu0 0.0
    %127 = vmatpush1.msra.mxu0 %v96
    %128 = vmatprep.subr.mxu0 0.0
    %129 = vmatpush1.msra.mxu0 %v97
    %130 = vmatprep.subr.mxu0 0.0
    %131 = vmatpush1.msra.mxu0 %v98
    %132 = vmatprep.subr.mxu0 0.0
    %133 = vmatpush1.msra.mxu0 %v99
    %134 = vmatprep.subr.mxu0 0.0
    %135 = vmatpush1.msra.mxu0 %v100
    %136 = vmatprep.subr.mxu0 0.0
    %137 = vmatpush1.msra.mxu0 %v101
    %138 = vmatprep.subr.mxu0 0.0
    %139 = vmatpush1.msra.mxu0 %v102
    %140 = vmatprep.subr.mxu0 0.0
    %141 = vmatpush1.msra.mxu0 %v103
    %142 = vmatprep.subr.mxu0 0.0
    %143 = vmatpush1.msra.mxu0 %v104
    %144 = vmatprep.subr.mxu0 0.0
    %145 = vmatpush1.msra.mxu0 0.0
    %146 = vmatprep.subr.mxu0 0.0
    %147 = vmatpush1.msra.mxu0 0.0
    %148 = vmatprep.subr.mxu0 0.0
    %149 = vmatpush1.msra.mxu0 0.0
    %150 = vmatprep.subr.mxu0 0.0
    %151 = vmatpush1.msra.mxu0 0.0
    %152 = vmatprep.subr.mxu0 0.0
    %153 = vmatpush1.msra.mxu0 0.0
    %154 = vmatprep.subr.mxu0 0.0
    %155 = vmatpush1.msra.mxu0 0.0
    %156 = vmatprep.subr.mxu0 0.0
    %157 = vmatpush1.msra.mxu0 0.0
    %158 = vmatprep.subr.mxu0 0.0
    %159 = vmatpush1.msra.mxu0 0.0
    %160 = vmatprep.subr.mxu0 0.0
    %161 = vmatpush1.msra.mxu0 0.0
    %162 = vmatprep.subr.mxu0 0.0
    %163 = vmatpush1.msra.mxu0 0.0
    %164 = vmatprep.subr.mxu0 0.0
    %165 = vmatpush1.msra.mxu0 0.0
    %166 = vmatprep.subr.mxu0 0.0
    %167 = vmatpush1.msra.mxu0 0.0
    %168 = vmatprep.subr.mxu0 0.0
    %169 = vmatpush1.msra.mxu0 0.0
    %170 = vmatprep.subr.mxu0 0.0
    %171 = vmatpush1.msra.mxu0 0.0
    %172 = vmatprep.subr.mxu0 0.0
    %173 = vmatpush1.msra.mxu0 0.0
    %174 = vmatprep.subr.mxu0 0.0
    %175 = vmatpush1.msra.mxu0 0.0
    %176 = vmatprep.mubr.f32.mxu0 0.0
    %177 = vmatmul.mubr.f32.gmra.mrb[0].mxu0 %v88
    %v178 = vpop.f32.mrb[0].mxu0
    %v179 = vadd.f32 %v110, %v178
    %v180 = vpop.f32.mrb[0].mxu0
    %181 = vdwg.mxu0
    %v182 = vmul.f32 %v179, 0.5
    %v183 = vmul.f32 %v179, 0.70710677
    %v184 = verf.f32.pop %v183
    %v185 = vadd.f32 %v184, 1.0
    %v186 = vmul.f32 %v182, %v185
    %v187 = vld [vmem:[#allocation5] sm:$0xff]
    %v188 = vld [vmem:[#allocation5 + $0x8] sm:$0xff]
    %v189 = vld [vmem:[#allocation5 + $0x10] sm:$0xff]
    %v190 = vld [vmem:[#allocation5 + $0x18] sm:$0xff]
    %v191 = vld [vmem:[#allocation5 + $0x20] sm:$0xff]
    %v192 = vld [vmem:[#allocation5 + $0x28] sm:$0xff]
    %v193 = vld [vmem:[#allocation5 + $0x30] sm:$0xff]
    %v194 = vld [vmem:[#allocation5 + $0x38] sm:$0xff]
    %v195 = vld [vmem:[#allocation5 + $0x40] sm:$0xff]
    %v196 = vld [vmem:[#allocation5 + $0x48] sm:$0xff]
    %v197 = vld [vmem:[#allocation5 + $0x50] sm:$0xff]
    %v198 = vld [vmem:[#allocation5 + $0x58] sm:$0xff]
    %v199 = vld [vmem:[#allocation5 + $0x60] sm:$0xff]
    %v200 = vld [vmem:[#allocation5 + $0x68] sm:$0xff]
    %v201 = vld [vmem:[#allocation5 + $0x70] sm:$0xff]
    %v202 = vld [vmem:[#allocation5 + $0x78] sm:$0xff]
    %v203 = vld [vmem:[%s4] sm:$0x1]
    %v205 = vlaneseq
    %v206 = vshrl.u32 %v205, 7
    %v207 = vsub.s32 0, %v206
    %v208 = vrot.slane %v203, %v207
    %210 = vmatprep.subr.mxu0 0.0
    %211 = vmatpush1.msra.mxu0 %v187
    %212 = vmatprep.subr.mxu0 0.0
    %213 = vmatpush1.msra.mxu0 %v188
    %214 = vmatprep.subr.mxu0 0.0
    %215 = vmatpush1.msra.mxu0 %v189
    %216 = vmatprep.subr.mxu0 0.0
    %217 = vmatpush1.msra.mxu0 %v190
    %218 = vmatprep.subr.mxu0 0.0
    %219 = vmatpush1.msra.mxu0 %v191
    %220 = vmatprep.subr.mxu0 0.0
    %221 = vmatpush1.msra.mxu0 %v192
    %222 = vmatprep.subr.mxu0 0.0
    %223 = vmatpush1.msra.mxu0 %v193
    %224 = vmatprep.subr.mxu0 0.0
    %225 = vmatpush1.msra.mxu0 %v194
    %226 = vmatprep.subr.mxu0 0.0
    %227 = vmatpush1.msra.mxu0 %v195
    %228 = vmatprep.subr.mxu0 0.0
    %229 = vmatpush1.msra.mxu0 %v196
    %230 = vmatprep.subr.mxu0 0.0
    %231 = vmatpush1.msra.mxu0 %v197
    %232 = vmatprep.subr.mxu0 0.0
    %233 = vmatpush1.msra.mxu0 %v198
    %234 = vmatprep.subr.mxu0 0.0
    %235 = vmatpush1.msra.mxu0 %v199
    %236 = vmatprep.subr.mxu0 0.0
    %237 = vmatpush1.msra.mxu0 %v200
    %238 = vmatprep.subr.mxu0 0.0
    %239 = vmatpush1.msra.mxu0 %v201
    %240 = vmatprep.subr.mxu0 0.0
    %241 = vmatpush1.msra.mxu0 %v202
    %242 = vmatprep.subr.mxu0 0.0
    %243 = vmatpush1.msra.mxu0 0.0
    %244 = vmatprep.subr.mxu0 0.0
    %245 = vmatpush1.msra.mxu0 0.0
    %246 = vmatprep.subr.mxu0 0.0
    %247 = vmatpush1.msra.mxu0 0.0
    %248 = vmatprep.subr.mxu0 0.0
    %249 = vmatpush1.msra.mxu0 0.0
    %250 = vmatprep.subr.mxu0 0.0
    %251 = vmatpush1.msra.mxu0 0.0
    %252 = vmatprep.subr.mxu0 0.0
    %253 = vmatpush1.msra.mxu0 0.0
    %254 = vmatprep.subr.mxu0 0.0
    %255 = vmatpush1.msra.mxu0 0.0
    %256 = vmatprep.subr.mxu0 0.0
    %257 = vmatpush1.msra.mxu0 0.0
    %258 = vmatprep.subr.mxu0 0.0
    %259 = vmatpush1.msra.mxu0 0.0
    %260 = vmatprep.subr.mxu0 0.0
    %261 = vmatpush1.msra.mxu0 0.0
    %262 = vmatprep.subr.mxu0 0.0
    %263 = vmatpush1.msra.mxu0 0.0
    %264 = vmatprep.subr.mxu0 0.0
    %265 = vmatpush1.msra.mxu0 0.0
    %266 = vmatprep.subr.mxu0 0.0
    %267 = vmatpush1.msra.mxu0 0.0
    %268 = vmatprep.subr.mxu0 0.0
    %269 = vmatpush1.msra.mxu0 0.0
    %270 = vmatprep.subr.mxu0 0.0
    %271 = vmatpush1.msra.mxu0 0.0
    %272 = vmatprep.subr.mxu0 0.0
    %273 = vmatpush1.msra.mxu0 0.0
    %274 = vmatprep.mubr.f32.mxu0 0.0
    %275 = vmatmul.mubr.f32.gmra.mrb[0].mxu0 %v186
    %v276 = vpop.f32.mrb[0].mxu0
    %v277 = vadd.f32 %v208, %v276
    %v278 = vpop.f32.mrb[0].mxu0
    %279 = vdwg.mxu0
    %v280 = vmul.f32 %v277, 0.5
    %v281 = vmul.f32 %v277, 0.70710677
    %v282 = verf.f32.pop %v281
    %v283 = vadd.f32 %v282, 1.0
    %v284 = vmul.f32 %v280, %v283
    %v285 = vld [vmem:[#allocation7] sm:$0xff]
    %v286 = vld [vmem:[#allocation7 + $0x8] sm:$0xff]
    %v287 = vld [vmem:[#allocation7 + $0x10] sm:$0xff]
    %v288 = vld [vmem:[#allocation7 + $0x18] sm:$0xff]
    %v289 = vld [vmem:[#allocation7 + $0x20] sm:$0xff]
    %v290 = vld [vmem:[#allocation7 + $0x28] sm:$0xff]
    %v291 = vld [vmem:[#allocation7 + $0x30] sm:$0xff]
    %v292 = vld [vmem:[#allocation7 + $0x38] sm:$0xff]
    %v293 = vld [vmem:[#allocation7 + $0x40] sm:$0xff]
    %v294 = vld [vmem:[#allocation7 + $0x48] sm:$0xff]
    %v295 = vld [vmem:[#allocation7 + $0x50] sm:$0xff]
    %v296 = vld [vmem:[#allocation7 + $0x58] sm:$0xff]
    %v297 = vld [vmem:[#allocation7 + $0x60] sm:$0xff]
    %v298 = vld [vmem:[#allocation7 + $0x68] sm:$0xff]
    %v299 = vld [vmem:[#allocation7 + $0x70] sm:$0xff]
    %v300 = vld [vmem:[#allocation7 + $0x78] sm:$0xff]
    %v301 = vld [vmem:[%s6] sm:$0x1]
    %v303 = vlaneseq
    %v304 = vshrl.u32 %v303, 7
    %v305 = vsub.s32 0, %v304
    %v306 = vrot.slane %v301, %v305
    %308 = vmatprep.subr.mxu0 0.0
    %309 = vmatpush1.msra.mxu0 %v285
    %310 = vmatprep.subr.mxu0 0.0
    %311 = vmatpush1.msra.mxu0 %v286
    %312 = vmatprep.subr.mxu0 0.0
    %313 = vmatpush1.msra.mxu0 %v287
    %314 = vmatprep.subr.mxu0 0.0
    %315 = vmatpush1.msra.mxu0 %v288
    %316 = vmatprep.subr.mxu0 0.0
    %317 = vmatpush1.msra.mxu0 %v289
    %318 = vmatprep.subr.mxu0 0.0
    %319 = vmatpush1.msra.mxu0 %v290
    %320 = vmatprep.subr.mxu0 0.0
    %321 = vmatpush1.msra.mxu0 %v291
    %322 = vmatprep.subr.mxu0 0.0
    %323 = vmatpush1.msra.mxu0 %v292
    %324 = vmatprep.subr.mxu0 0.0
    %325 = vmatpush1.msra.mxu0 %v293
    %326 = vmatprep.subr.mxu0 0.0
    %327 = vmatpush1.msra.mxu0 %v294
    %328 = vmatprep.subr.mxu0 0.0
    %329 = vmatpush1.msra.mxu0 %v295
    %330 = vmatprep.subr.mxu0 0.0
    %331 = vmatpush1.msra.mxu0 %v296
    %332 = vmatprep.subr.mxu0 0.0
    %333 = vmatpush1.msra.mxu0 %v297
    %334 = vmatprep.subr.mxu0 0.0
    %335 = vmatpush1.msra.mxu0 %v298
    %336 = vmatprep.subr.mxu0 0.0
    %337 = vmatpush1.msra.mxu0 %v299
    %338 = vmatprep.subr.mxu0 0.0
    %339 = vmatpush1.msra.mxu0 %v300
    %340 = vmatprep.subr.mxu0 0.0
    %341 = vmatpush1.msra.mxu0 0.0
    %342 = vmatprep.subr.mxu0 0.0
    %343 = vmatpush1.msra.mxu0 0.0
    %344 = vmatprep.subr.mxu0 0.0
    %345 = vmatpush1.msra.mxu0 0.0
    %346 = vmatprep.subr.mxu0 0.0
    %347 = vmatpush1.msra.mxu0 0.0
    %348 = vmatprep.subr.mxu0 0.0
    %349 = vmatpush1.msra.mxu0 0.0
    %350 = vmatprep.subr.mxu0 0.0
    %351 = vmatpush1.msra.mxu0 0.0
    %352 = vmatprep.subr.mxu0 0.0
    %353 = vmatpush1.msra.mxu0 0.0
    %354 = vmatprep.subr.mxu0 0.0
    %355 = vmatpush1.msra.mxu0 0.0
    %356 = vmatprep.subr.mxu0 0.0
    %357 = vmatpush1.msra.mxu0 0.0
    %358 = vmatprep.subr.mxu0 0.0
    %359 = vmatpush1.msra.mxu0 0.0
    %360 = vmatprep.subr.mxu0 0.0
    %361 = vmatpush1.msra.mxu0 0.0
    %362 = vmatprep.subr.mxu0 0.0
    %363 = vmatpush1.msra.mxu0 0.0
    %364 = vmatprep.subr.mxu0 0.0
    %365 = vmatpush1.msra.mxu0 0.0
    %366 = vmatprep.subr.mxu0 0.0
    %367 = vmatpush1.msra.mxu0 0.0
    %368 = vmatprep.subr.mxu0 0.0
    %369 = vmatpush1.msra.mxu0 0.0
    %370 = vmatprep.subr.mxu0 0.0
    %371 = vmatpush1.msra.mxu0 0.0
    %372 = vmatprep.mubr.f32.mxu0 0.0
    %373 = vmatmul.mubr.f32.gmra.mrb[0].mxu0 %v284
    %v374 = vpop.f32.mrb[0].mxu0
    %v375 = vadd.f32 %v306, %v374
    %v376 = vpop.f32.mrb[0].mxu0
    %377 = vdwg.mxu0
    %v378 = vtanh.pop %v375
    %v379 = vld [vmem:[#allocation8] sm:$0xff]
    %v380 = vld [vmem:[#allocation8 + $0x8] sm:$0xff]
    %v381 = vld [vmem:[#allocation8 + $0x10] sm:$0xff]
    %v382 = vld [vmem:[#allocation8 + $0x18] sm:$0xff]
    %v383 = vld [vmem:[#allocation8 + $0x20] sm:$0xff]
    %v384 = vld [vmem:[#allocation8 + $0x28] sm:$0xff]
    %v385 = vld [vmem:[#allocation8 + $0x30] sm:$0xff]
    %v386 = vld [vmem:[#allocation8 + $0x38] sm:$0xff]
    %v387 = vld [vmem:[#allocation8 + $0x40] sm:$0xff]
    %v388 = vld [vmem:[#allocation8 + $0x48] sm:$0xff]
    %v389 = vld [vmem:[#allocation8 + $0x50] sm:$0xff]
    %v390 = vld [vmem:[#allocation8 + $0x58] sm:$0xff]
    %v391 = vld [vmem:[#allocation8 + $0x60] sm:$0xff]
    %v392 = vld [vmem:[#allocation8 + $0x68] sm:$0xff]
    %v393 = vld [vmem:[#allocation8 + $0x70] sm:$0xff]
    %v394 = vld [vmem:[#allocation8 + $0x78] sm:$0xff]
    %v395 = vld [vmem:[%s8] sm:$0x1]
    %v397 = vlaneseq
    %v398 = vshrl.u32 %v397, 7
    %v399 = vsub.s32 0, %v398
    %v400 = vrot.slane %v395, %v399
    %402 = vmatprep.subr.mxu0 0.0
    %403 = vmatpush1.msra.mxu0 %v379
    %404 = vmatprep.subr.mxu0 0.0
    %405 = vmatpush1.msra.mxu0 %v380
    %406 = vmatprep.subr.mxu0 0.0
    %407 = vmatpush1.msra.mxu0 %v381
    %408 = vmatprep.subr.mxu0 0.0
    %409 = vmatpush1.msra.mxu0 %v382
    %410 = vmatprep.subr.mxu0 0.0
    %411 = vmatpush1.msra.mxu0 %v383
    %412 = vmatprep.subr.mxu0 0.0
    %413 = vmatpush1.msra.mxu0 %v384
    %414 = vmatprep.subr.mxu0 0.0
    %415 = vmatpush1.msra.mxu0 %v385
    %416 = vmatprep.subr.mxu0 0.0
    %417 = vmatpush1.msra.mxu0 %v386
    %418 = vmatprep.subr.mxu0 0.0
    %419 = vmatpush1.msra.mxu0 %v387
    %420 = vmatprep.subr.mxu0 0.0
    %421 = vmatpush1.msra.mxu0 %v388
    %422 = vmatprep.subr.mxu0 0.0
    %423 = vmatpush1.msra.mxu0 %v389
    %424 = vmatprep.subr.mxu0 0.0
    %425 = vmatpush1.msra.mxu0 %v390
    %426 = vmatprep.subr.mxu0 0.0
    %427 = vmatpush1.msra.mxu0 %v391
    %428 = vmatprep.subr.mxu0 0.0
    %429 = vmatpush1.msra.mxu0 %v392
    %430 = vmatprep.subr.mxu0 0.0
    %431 = vmatpush1.msra.mxu0 %v393
    %432 = vmatprep.subr.mxu0 0.0
    %433 = vmatpush1.msra.mxu0 %v394
    %434 = vmatprep.subr.mxu0 0.0
    %435 = vmatpush1.msra.mxu0 0.0
    %436 = vmatprep.subr.mxu0 0.0
    %437 = vmatpush1.msra.mxu0 0.0
    %438 = vmatprep.subr.mxu0 0.0
    %439 = vmatpush1.msra.mxu0 0.0
    %440 = vmatprep.subr.mxu0 0.0
    %441 = vmatpush1.msra.mxu0 0.0
    %442 = vmatprep.subr.mxu0 0.0
    %443 = vmatpush1.msra.mxu0 0.0
    %444 = vmatprep.subr.mxu0 0.0
    %445 = vmatpush1.msra.mxu0 0.0
    %446 = vmatprep.subr.mxu0 0.0
    %447 = vmatpush1.msra.mxu0 0.0
    %448 = vmatprep.subr.mxu0 0.0
    %449 = vmatpush1.msra.mxu0 0.0
    %450 = vmatprep.subr.mxu0 0.0
    %451 = vmatpush1.msra.mxu0 0.0
    %452 = vmatprep.subr.mxu0 0.0
    %453 = vmatpush1.msra.mxu0 0.0
    %454 = vmatprep.subr.mxu0 0.0
    %455 = vmatpush1.msra.mxu0 0.0
    %456 = vmatprep.subr.mxu0 0.0
    %457 = vmatpush1.msra.mxu0 0.0
    %458 = vmatprep.subr.mxu0 0.0
    %459 = vmatpush1.msra.mxu0 0.0
    %460 = vmatprep.subr.mxu0 0.0
    %461 = vmatpush1.msra.mxu0 0.0
    %462 = vmatprep.subr.mxu0 0.0
    %463 = vmatpush1.msra.mxu0 0.0
    %464 = vmatprep.subr.mxu0 0.0
    %465 = vmatpush1.msra.mxu0 0.0
    %466 = vmatprep.mubr.f32.mxu0 0.0
    %467 = vmatmul.mubr.f32.gmra.mrb[0].mxu0 %v378
    %v468 = vpop.f32.mrb[0].mxu0
    %v469 = vadd.f32 %v400, %v468
    %v470 = vpop.f32.mrb[0].mxu0
    %471 = vdwg.mxu0
    %v472 = vtanh.pop %v469
    %473 = vst [vmem:[#allocation10] sm:$0xff] %v472
    // Predicated region
    $region54: #{generic_generator_forward.1} parent=1 // pred_check
      _
    $region55: #{generic_generator_forward.1} parent=1 // pred_check_branch
      %475 = sbr.rel (0) target = $region57
    $region56: #{generic_generator_forward.1} parent=1 // pred_region
      %s477 = ssub.s32 128, 128
      %478 = vsyncadd [#allocation4], %s477
      %s480 = sshll.u32 [#allocation10], 4
      %s481 = int_to_ptr.vmem [resolvable:$true] %s480
      %483 = dma.vmem_to_hbm [thread:$0]  %s481, 128, %s9, [#allocation4]
    $region57: #{generic_generator_forward.1} parent=1 // pred_fallthru
      _
    // Predicated region
    $region58: #{generic_generator_forward.1} parent=1 // pred_check
      _
    $region59: #{generic_generator_forward.1} parent=1 // pred_check_branch
      %485 = sbr.rel (0) target = $region61
    $region60: #{generic_generator_forward.1} parent=1 // pred_region
      %486 = dma.done [#allocation4], 128
    $region61: #{generic_generator_forward.1} parent=1 // pred_fallthru
      _
    %487 = vsyncpa [#allocation3], 1
    %488 = vsyncpa [#allocation6], 1
    %489 = vsyncpa [#allocation9], 1
    %490 = vsyncpa [#allocation4], 1

</llo_original>
